<compile_context>
chip_gen: v7x
topology: tpu7x:2x2x1
jax: 0.10.0
libtpu: 0.0.40
codegen_flags: <defaults>
</compile_context>

<pallas_src>
import functools

import jax
import jax.numpy as jnp
from jax.experimental import pallas as pl
from jax.experimental.pallas import tpu as pltpu


def _reverse_chunks(x, group, unit):
    """Within each aligned `group`-wide window of the last axis of `x`,
    reverse the order of its `unit`-wide chunks (unit=1 -> element reversal).

    Requires pow2 group/unit, unit <= group <= n, group | n.  Reversal inside
    a pow2 group == XOR-ing the index bits in [unit, group); flipping bit k is
    a select between roll(+k) and roll(-k).  Only roll / iota / where / bit
    ops are used (always lower on TPU; no lax.rev or gather).
    """
    if group <= unit:
        return x
    n = x.shape[-1]
    ax = x.ndim - 1

    # Per-lane index built once at (1, n); all setup math is (1, n)-sized.
    idx = jax.lax.broadcasted_iota(jnp.int32, (1, n), 1)
    # Tiny direction probe (one (1, n) roll + compare): pins the roll
    # convention at negligible cost (independent of block size), instead of
    # the old full-block probe roll.
    prev_idx = jnp.where(idx == 0, n - 1, idx - 1)
    roll_fwd = pltpu.roll(idx, 1, axis=1) == prev_idx      # uniform (1, n)
    # Fold the probe into an "effective index" (n-1-idx == idx with all low
    # bits flipped, n pow2).  One int32 sublane-broadcast; no i1 broadcasts,
    # and per-stage work drops to: and + cmp + select on the VPU.
    eff = jnp.where(roll_fwd, idx, (n - 1) - idx)
    eff = jnp.broadcast_to(eff, x.shape)

    k = unit
    while k < group:
        rolled_a = pltpu.roll(x, k, axis=ax)               # x[i-k] (fwd conv.)
        if 2 * k == n:
            # Top stage when the group spans the whole axis: roll by n/2 is
            # its own inverse direction -> single roll, no select.
            x = rolled_a
        else:
            rolled_b = pltpu.roll(x, n - k, axis=ax)       # x[i+k] (fwd conv.)
            x = jnp.where((eff & k) != 0, rolled_a, rolled_b)
        k *= 2
    return x


def _flip_kernel(W, tL, flag_ref, x_ref, o_ref):
    # flag == 1 -> horizontal flip: reverse elements inside each W-wide row
    #              segment of the flattened plane.
    # flag == 0 -> vertical flip: reverse the order of W-wide row segments
    #              inside this block; the cross-block row reversal is handled
    #              by the mirrored *input* index_map.
    @pl.when(flag_ref[0] == 1)
    def _():
        o_ref[...] = _reverse_chunks(x_ref[...], group=W, unit=1)

    @pl.when(flag_ref[0] == 0)
    def _():
        o_ref[...] = _reverse_chunks(x_ref[...], group=tL, unit=W)


def random_image_flip(img, flag, *, block_bytes=None):
    """img: (N, C, H, W).  flag: int32 scalar, 1 -> hflip, 0 -> vflip."""
    N, C, H, W = img.shape
    if (H & (H - 1)) or (W & (W - 1)):
        # TODO(synk): non-power-of-two H/W (e.g. 224) needs a gather / XLA
        # lax.rev based reversal path; the roll butterfly assumes pow2 sizes.
        raise NotImplementedError("random_image_flip kernel requires pow2 H, W")

    R, L = N * C, H * W
    itemsize = jnp.dtype(img.dtype).itemsize
    sub = 8 * (4 // itemsize)          # min sublane tile: f32 8, bf16 16, i8 32

    # Generation-aware budgets (v7x: 64 MiB physical VMEM; v5e/v6e: 128 MiB).
    try:
        vmem_phys = int(pltpu.get_tpu_info().vmem_capacity_bytes)
    except Exception:  # pragma: no cover - CPU / older runtime fallback
        vmem_phys = 128 * 1024 * 1024
    if block_bytes is None:
        block_bytes = min(2 << 20, vmem_phys >> 5)

    # Lane tile: smallest pow2 row-chunk cH with cH*W >= 512 lanes (or the
    # whole plane for tiny images).  Keeps stores lane-dense / unmasked while
    # minimizing the vflip butterfly depth (log2(cH) stages; 0 when W >= 512).
    cH = 1
    while cH < H and cH * W < 512:
        cH *= 2
    tL = cH * W                         # pow2 => multiple of 128, or tL == L
    nL = L // tL

    # Sublane tile: fill the byte budget with rows (multiple of the dtype
    # sublane tile), then keep >= ~8 grid steps when the data allows so the
    # pipeline overlaps and v7x can shard across both TensorCores.
    tR = max(sub, (block_bytes // (tL * itemsize)) // sub * sub)
    min_steps = 8
    if nL < min_steps:
        want_nR = (min_steps + nL - 1) // nL
        rows_per_blk = (R + want_nR - 1) // want_nR
        rows_per_blk = ((rows_per_blk + sub - 1) // sub) * sub
        tR = min(tR, max(sub, rows_per_blk))
    tR = min(tR, R)                     # tR == R (full extent) or multiple of sub
    nR = pl.cdiv(R, tR)

    x2 = img.reshape(R, L)              # free row-major reshape
    flag_arr = jnp.asarray(flag, jnp.int32).reshape((1,))

    def in_map(r, l, flag):
        # vflip (flag==0): read the mirrored row-block of the plane;
        # hflip (flag==1): identity.  Pure scalar-core integer arithmetic.
        return (r, l + (1 - flag[0]) * (nL - 1 - 2 * l))

    def out_map(r, l, flag):
        return (r, l)                   # writeback stays monotone/sequential

    block_bytes_actual = tR * tL * itemsize
    vmem_limit = int(min(vmem_phys // 2,
                         max(32 << 20, 16 * block_bytes_actual)))

    out2 = pl.pallas_call(
        functools.partial(_flip_kernel, W, tL),
        out_shape=jax.ShapeDtypeStruct((R, L), img.dtype),
        grid_spec=pltpu.PrefetchScalarGridSpec(
            num_scalar_prefetch=1,
            grid=(nR, nL),
            in_specs=[pl.BlockSpec((tR, tL), in_map)],
            out_specs=pl.BlockSpec((tR, tL), out_map),
        ),
        compiler_params=pltpu.CompilerParams(
            dimension_semantics=("parallel", "parallel"),
            vmem_limit_bytes=vmem_limit),
        cost_estimate=pl.CostEstimate(
            flops=0, transcendentals=0,
            bytes_accessed=2 * R * L * itemsize),
    )(flag_arr, x2)
    return out2.reshape(N, C, H, W)


if __name__ == "__main__":
    key = jax.random.PRNGKey(0)
    k_img, k_coin = jax.random.split(key)

    # Small NCHW batch consistent with the module's forward.
    img = jax.random.normal(k_img, (2, 4, 16, 16), dtype=jnp.float32)

    # Deterministic stand-in for `random.random() < self.p` with p = 0.5.
    p = 0.5
    coin = jax.random.uniform(k_coin, ())
    flag = (coin < p).astype(jnp.int32)          # 1 -> hflip, 0 -> vflip

    out = jax.block_until_ready(random_image_flip(img, flag))
    ref = jnp.where(flag == 1, jnp.flip(img, axis=-1), jnp.flip(img, axis=-2))
    assert out.shape == img.shape and out.dtype == img.dtype
    assert jnp.array_equal(out, ref)

    # Exercise the other branch too (same compiled executable, flag is data).
    out2 = jax.block_until_ready(random_image_flip(img, 1 - flag))
    ref2 = jnp.where(flag == 1, jnp.flip(img, axis=-2), jnp.flip(img, axis=-1))
    assert jnp.array_equal(out2, ref2)

    # Multi-step tiled path: mirrored vflip input map, 8-step grid, tL < L.
    img_b = jax.random.normal(k_img, (2, 3, 32, 128), dtype=jnp.float32)
    for f in (0, 1):
        o = jax.block_until_ready(
            random_image_flip(img_b, jnp.int32(f), block_bytes=1 << 14))
        r = jnp.flip(img_b, axis=-1 if f == 1 else -2)
        assert jnp.array_equal(o, r)

    # Partial last sublane block (R=20, tR=16) together with the mirrored map.
    img_c = jax.random.normal(k_coin, (5, 4, 16, 128), dtype=jnp.float32)
    for f in (0, 1):
        o = jax.block_until_ready(
            random_image_flip(img_c, jnp.int32(f), block_bytes=1 << 16))
        r = jnp.flip(img_c, axis=-1 if f == 1 else -2)
        assert jnp.array_equal(o, r)

    print("KERNEL_OK")
</pallas_src>

<mosaic_0001>
module attributes {stable_mosaic.version = 11 : i64} {
  func.func @_flip_kernel(%arg0: i32, %arg1: i32, %arg2: memref<1xi32, #tpu.memory_space<smem>>, %arg3: memref<8x256xf32, #tpu.memory_space<vmem>>, %arg4: memref<8x256xf32, #tpu.memory_space<vmem>>) attributes {dimension_semantics = [#tpu.dimension_semantics<parallel>, #tpu.dimension_semantics<parallel>], iteration_bounds = array<i64: 1, 1>, scalar_prefetch = 1 : i64, scratch_operands = 0 : i64, tpu.core_type = #tpu.core_type<tc>, window_params = [{transform_indices = @transform_0, window_bounds = array<i64: 8, 256>}, {transform_indices = @transform_1, window_bounds = array<i64: 8, 256>}]} {
    %c0 = arith.constant 0 : index
    %0 = memref.load %arg2[%c0] : memref<1xi32, #tpu.memory_space<smem>>
    %c1_i32 = arith.constant 1 : i32
    %1 = arith.cmpi eq, %0, %c1_i32 : i32
    %2 = arith.extui %1 : i1 to i32
    %c0_i32 = arith.constant 0 : i32
    %3 = arith.cmpi ne, %2, %c0_i32 : i32
    scf.if %3 {
      %c0_3 = arith.constant 0 : index
      %c0_4 = arith.constant 0 : index
      %8 = vector.load %arg3[%c0_3, %c0_4] : memref<8x256xf32, #tpu.memory_space<vmem>>, vector<8x256xf32>
      %9 = tpu.iota {dimensions = array<i32: 1>} : vector<1x256xi32>
      %c0_i32_5 = arith.constant 0 : i32
      %10 = vector.broadcast %c0_i32_5 : i32 to vector<1x256xi32>
      %11 = arith.cmpi eq, %9, %10 : vector<1x256xi32>
      %c1_i32_6 = arith.constant 1 : i32
      %12 = vector.broadcast %c1_i32_6 : i32 to vector<1x256xi32>
      %13 = arith.subi %9, %12 : vector<1x256xi32>
      %c255_i32 = arith.constant 255 : i32
      %14 = vector.broadcast %c255_i32 : i32 to vector<1x256xi32>
      %15 = arith.select %11, %14, %13 : vector<1x256xi1>, vector<1x256xi32>
      %c1_i32_7 = arith.constant 1 : i32
      %16 = tpu.dynamic_rotate %9 by %c1_i32_7 dim 1 : vector<1x256xi32>, i32 -> vector<1x256xi32>
      %17 = arith.cmpi eq, %16, %15 : vector<1x256xi32>
      %c255_i32_8 = arith.constant 255 : i32
      %18 = vector.broadcast %c255_i32_8 : i32 to vector<1x256xi32>
      %19 = arith.subi %18, %9 : vector<1x256xi32>
      %20 = arith.select %17, %9, %19 : vector<1x256xi1>, vector<1x256xi32>
      %21 = vector.shape_cast %20 : vector<1x256xi32> to vector<1x256xi32>
      %22 = vector.broadcast %21 : vector<1x256xi32> to vector<8x256xi32>
      %c1_i32_9 = arith.constant 1 : i32
      %23 = tpu.dynamic_rotate %8 by %c1_i32_9 dim 1 : vector<8x256xf32>, i32 -> vector<8x256xf32>
      %c255_i32_10 = arith.constant 255 : i32
      %24 = tpu.dynamic_rotate %8 by %c255_i32_10 dim 1 : vector<8x256xf32>, i32 -> vector<8x256xf32>
      %c1_i32_11 = arith.constant 1 : i32
      %25 = vector.broadcast %c1_i32_11 : i32 to vector<8x256xi32>
      %26 = arith.andi %22, %25 : vector<8x256xi32>
      %c0_i32_12 = arith.constant 0 : i32
      %27 = vector.broadcast %c0_i32_12 : i32 to vector<8x256xi32>
      %28 = arith.cmpi ne, %26, %27 : vector<8x256xi32>
      %29 = arith.select %28, %23, %24 : vector<8x256xi1>, vector<8x256xf32>
      %c2_i32 = arith.constant 2 : i32
      %30 = tpu.dynamic_rotate %29 by %c2_i32 dim 1 : vector<8x256xf32>, i32 -> vector<8x256xf32>
      %c254_i32 = arith.constant 254 : i32
      %31 = tpu.dynamic_rotate %29 by %c254_i32 dim 1 : vector<8x256xf32>, i32 -> vector<8x256xf32>
      %c2_i32_13 = arith.constant 2 : i32
      %32 = vector.broadcast %c2_i32_13 : i32 to vector<8x256xi32>
      %33 = arith.andi %22, %32 : vector<8x256xi32>
      %c0_i32_14 = arith.constant 0 : i32
      %34 = vector.broadcast %c0_i32_14 : i32 to vector<8x256xi32>
      %35 = arith.cmpi ne, %33, %34 : vector<8x256xi32>
      %36 = arith.select %35, %30, %31 : vector<8x256xi1>, vector<8x256xf32>
      %c4_i32 = arith.constant 4 : i32
      %37 = tpu.dynamic_rotate %36 by %c4_i32 dim 1 : vector<8x256xf32>, i32 -> vector<8x256xf32>
      %c252_i32 = arith.constant 252 : i32
      %38 = tpu.dynamic_rotate %36 by %c252_i32 dim 1 : vector<8x256xf32>, i32 -> vector<8x256xf32>
      %c4_i32_15 = arith.constant 4 : i32
      %39 = vector.broadcast %c4_i32_15 : i32 to vector<8x256xi32>
      %40 = arith.andi %22, %39 : vector<8x256xi32>
      %c0_i32_16 = arith.constant 0 : i32
      %41 = vector.broadcast %c0_i32_16 : i32 to vector<8x256xi32>
      %42 = arith.cmpi ne, %40, %41 : vector<8x256xi32>
      %43 = arith.select %42, %37, %38 : vector<8x256xi1>, vector<8x256xf32>
      %c8_i32 = arith.constant 8 : i32
      %44 = tpu.dynamic_rotate %43 by %c8_i32 dim 1 : vector<8x256xf32>, i32 -> vector<8x256xf32>
      %c248_i32 = arith.constant 248 : i32
      %45 = tpu.dynamic_rotate %43 by %c248_i32 dim 1 : vector<8x256xf32>, i32 -> vector<8x256xf32>
      %c8_i32_17 = arith.constant 8 : i32
      %46 = vector.broadcast %c8_i32_17 : i32 to vector<8x256xi32>
      %47 = arith.andi %22, %46 : vector<8x256xi32>
      %c0_i32_18 = arith.constant 0 : i32
      %48 = vector.broadcast %c0_i32_18 : i32 to vector<8x256xi32>
      %49 = arith.cmpi ne, %47, %48 : vector<8x256xi32>
      %50 = arith.select %49, %44, %45 : vector<8x256xi1>, vector<8x256xf32>
      %c0_19 = arith.constant 0 : index
      %c0_20 = arith.constant 0 : index
      %51 = vector.load %arg4[%c0_19, %c0_20] : memref<8x256xf32, #tpu.memory_space<vmem>>, vector<8x256xf32>
      tpu.vector_store %arg4[%c0_19, %c0_20], %50 {strides = array<i32>} : memref<8x256xf32, #tpu.memory_space<vmem>>, vector<8x256xf32>,
    } else {
    }
    %c0_0 = arith.constant 0 : index
    %4 = memref.load %arg2[%c0_0] : memref<1xi32, #tpu.memory_space<smem>>
    %c0_i32_1 = arith.constant 0 : i32
    %5 = arith.cmpi eq, %4, %c0_i32_1 : i32
    %6 = arith.extui %5 : i1 to i32
    %c0_i32_2 = arith.constant 0 : i32
    %7 = arith.cmpi ne, %6, %c0_i32_2 : i32
    scf.if %7 {
      %c0_3 = arith.constant 0 : index
      %c0_4 = arith.constant 0 : index
      %8 = vector.load %arg3[%c0_3, %c0_4] : memref<8x256xf32, #tpu.memory_space<vmem>>, vector<8x256xf32>
      %9 = tpu.iota {dimensions = array<i32: 1>} : vector<1x256xi32>
      %c0_i32_5 = arith.constant 0 : i32
      %10 = vector.broadcast %c0_i32_5 : i32 to vector<1x256xi32>
      %11 = arith.cmpi eq, %9, %10 : vector<1x256xi32>
      %c1_i32_6 = arith.constant 1 : i32
      %12 = vector.broadcast %c1_i32_6 : i32 to vector<1x256xi32>
      %13 = arith.subi %9, %12 : vector<1x256xi32>
      %c255_i32 = arith.constant 255 : i32
      %14 = vector.broadcast %c255_i32 : i32 to vector<1x256xi32>
      %15 = arith.select %11, %14, %13 : vector<1x256xi1>, vector<1x256xi32>
      %c1_i32_7 = arith.constant 1 : i32
      %16 = tpu.dynamic_rotate %9 by %c1_i32_7 dim 1 : vector<1x256xi32>, i32 -> vector<1x256xi32>
      %17 = arith.cmpi eq, %16, %15 : vector<1x256xi32>
      %c255_i32_8 = arith.constant 255 : i32
      %18 = vector.broadcast %c255_i32_8 : i32 to vector<1x256xi32>
      %19 = arith.subi %18, %9 : vector<1x256xi32>
      %20 = arith.select %17, %9, %19 : vector<1x256xi1>, vector<1x256xi32>
      %21 = vector.shape_cast %20 : vector<1x256xi32> to vector<1x256xi32>
      %22 = vector.broadcast %21 : vector<1x256xi32> to vector<8x256xi32>
      %c16_i32 = arith.constant 16 : i32
      %23 = tpu.dynamic_rotate %8 by %c16_i32 dim 1 : vector<8x256xf32>, i32 -> vector<8x256xf32>
      %c240_i32 = arith.constant 240 : i32
      %24 = tpu.dynamic_rotate %8 by %c240_i32 dim 1 : vector<8x256xf32>, i32 -> vector<8x256xf32>
      %c16_i32_9 = arith.constant 16 : i32
      %25 = vector.broadcast %c16_i32_9 : i32 to vector<8x256xi32>
      %26 = arith.andi %22, %25 : vector<8x256xi32>
      %c0_i32_10 = arith.constant 0 : i32
      %27 = vector.broadcast %c0_i32_10 : i32 to vector<8x256xi32>
      %28 = arith.cmpi ne, %26, %27 : vector<8x256xi32>
      %29 = arith.select %28, %23, %24 : vector<8x256xi1>, vector<8x256xf32>
      %c32_i32 = arith.constant 32 : i32
      %30 = tpu.dynamic_rotate %29 by %c32_i32 dim 1 : vector<8x256xf32>, i32 -> vector<8x256xf32>
      %c224_i32 = arith.constant 224 : i32
      %31 = tpu.dynamic_rotate %29 by %c224_i32 dim 1 : vector<8x256xf32>, i32 -> vector<8x256xf32>
      %c32_i32_11 = arith.constant 32 : i32
      %32 = vector.broadcast %c32_i32_11 : i32 to vector<8x256xi32>
      %33 = arith.andi %22, %32 : vector<8x256xi32>
      %c0_i32_12 = arith.constant 0 : i32
      %34 = vector.broadcast %c0_i32_12 : i32 to vector<8x256xi32>
      %35 = arith.cmpi ne, %33, %34 : vector<8x256xi32>
      %36 = arith.select %35, %30, %31 : vector<8x256xi1>, vector<8x256xf32>
      %c64_i32 = arith.constant 64 : i32
      %37 = tpu.dynamic_rotate %36 by %c64_i32 dim 1 : vector<8x256xf32>, i32 -> vector<8x256xf32>
      %c192_i32 = arith.constant 192 : i32
      %38 = tpu.dynamic_rotate %36 by %c192_i32 dim 1 : vector<8x256xf32>, i32 -> vector<8x256xf32>
      %c64_i32_13 = arith.constant 64 : i32
      %39 = vector.broadcast %c64_i32_13 : i32 to vector<8x256xi32>
      %40 = arith.andi %22, %39 : vector<8x256xi32>
      %c0_i32_14 = arith.constant 0 : i32
      %41 = vector.broadcast %c0_i32_14 : i32 to vector<8x256xi32>
      %42 = arith.cmpi ne, %40, %41 : vector<8x256xi32>
      %43 = arith.select %42, %37, %38 : vector<8x256xi1>, vector<8x256xf32>
      %c128_i32 = arith.constant 128 : i32
      %44 = tpu.dynamic_rotate %43 by %c128_i32 dim 1 : vector<8x256xf32>, i32 -> vector<8x256xf32>
      %c0_15 = arith.constant 0 : index
      %c0_16 = arith.constant 0 : index
      %45 = vector.load %arg4[%c0_15, %c0_16] : memref<8x256xf32, #tpu.memory_space<vmem>>, vector<8x256xf32>
      tpu.vector_store %arg4[%c0_15, %c0_16], %44 {strides = array<i32>} : memref<8x256xf32, #tpu.memory_space<vmem>>, vector<8x256xf32>,
    } else {
    }
    return
  }
  func.func @transform_0(%arg0: i32, %arg1: i32, %arg2: memref<1xi32, #tpu.memory_space<smem>>) -> (i32, i32) {
    %c0 = arith.constant 0 : index
    %0 = memref.load %arg2[%c0] : memref<1xi32, #tpu.memory_space<smem>>
    %c1_i32 = arith.constant 1 : i32
    %1 = arith.subi %c1_i32, %0 : i32
    %c2_i32 = arith.constant 2 : i32
    %2 = arith.muli %c2_i32, %arg1 : i32
    %c0_i32 = arith.constant 0 : i32
    %3 = arith.subi %c0_i32, %2 : i32
    %4 = arith.muli %1, %3 : i32
    %5 = arith.addi %arg1, %4 : i32
    %c0_i32_0 = arith.constant 0 : i32
    return %arg0, %5 : i32, i32
  }
  func.func @transform_1(%arg0: i32, %arg1: i32, %arg2: memref<1xi32, #tpu.memory_space<smem>>) -> (i32, i32) {
    %c0_i32 = arith.constant 0 : i32
    return %arg0, %arg1 : i32, i32
  }
}

</mosaic_0001>

<llo_original>
// kernel: tpu_custom_call.1
$region0: #{tpu_custom_call.1}
  #allocation0 [shape = 'u32[]', space=smem, size = 0x4, offset = 0x4, fixed_abs, tag = 'smem constant byte address 0x4 - core index']
  #allocation1 [shape = 'u32[144,128]{1,0:T(1,128)}', space=vmem, size = 0x12000, scoped, tag = 'internal scratch']
  #allocation2 [shape = 's32[1]{0}', space=sflag, size = 0x4, scoped, tag = 'scoped memory for tpu_custom_call.1']
  #allocation3 [shape = 's32[1]{0:T(128)S(6)}', space=smem, size = 0x200, scoped, tag = 'prefetched SMEM operand 0']
  %s0 = inlined_call_operand.<no memory space> [shape: s32[1], index: 0, kind: input, shape index: {}]
  %s1 = inlined_call_operand.hbm [shape: f32[8,256], index: 1, kind: input, shape index: {}]
  %s2 = inlined_call_operand.hbm [shape: f32[8,256], index: 2, kind: output, shape index: {}]
  %s3 = sld [smem:[#allocation0]]
  $region26: #{tpu_custom_call.1} parent=0
    _
  %s5 = ssub.s32 1, %s3
  %s6 = scalar_select 0, %s5, %s3
  %7 = sst [smem:[#allocation3]] %s0
  $region1: #{tpu_custom_call.1} parent=0
    #allocation4 [shape = 'u8[8192]{0}', space=vmem, size = 0x2000, scoped, tag = 'input window, operand 1, single buffered']
    #allocation5 [shape = 's32[1]{0}', space=sflag, size = 0x4, scoped, tag = 'scoped memory for tpu_custom_call.1']
    #allocation6 [shape = 's32[1]{0}', space=sflag, size = 0x4, scoped, tag = 'scoped memory for tpu_custom_call.1']
    #allocation7 [shape = 'u8[8192]{0}', space=vmem, size = 0x2000, scoped, tag = 'output window, operand 0, single buffered']
    %8 = vsyncpa [#allocation5], 0
    %9 = vsyncpa [#allocation6], 0
    // Predicated region
    $region2: #{tpu_custom_call.1} parent=1 // pred_check
      _
    $region3: #{tpu_custom_call.1} parent=1 // pred_check_branch
      %11 = sbr.rel (0) target = $region5
    $region4: #{tpu_custom_call.1} parent=1 // pred_region
      %s12 = sld [smem:[#allocation3]]
      %s13 = ssub.s32 1, %s12
      %s14 = smul.u32 0, 2
      %s15 = ssub.s32 0, %s14
      %s16 = smul.u32 %s13, %s15
      %s17 = sadd.s32 0, %s16
      %s18 = smul.u32 2, %s17
      %s20 = ssub.s32 256, 256
      %21 = vsyncadd [#allocation5], %s20
      %s22 = smul.addr %s18, 128
      %s23 = scalar_lea.hbm %s1, %s22
      %s25 = sshll.u32 [#allocation4], 4
      %s26 = int_to_ptr.vmem [resolvable:$true] %s25
      %28 = dma.hbm_to_vmem [thread:$0]  %s23, 256, %s26, [#allocation5]
    $region5: #{tpu_custom_call.1} parent=1 // pred_fallthru
      _
    // Predicated region
    $region6: #{tpu_custom_call.1} parent=1 // pred_check
      _
    $region7: #{tpu_custom_call.1} parent=1 // pred_check_branch
      %30 = sbr.rel (0) target = $region9
    $region8: #{tpu_custom_call.1} parent=1 // pred_region
      %31 = dma.done [#allocation5], 256
    $region9: #{tpu_custom_call.1} parent=1 // pred_fallthru
      _
    %s32 = sld [smem:[#allocation3]]
    %s33 = ssub.s32 1, %s32
    %s34 = smul.u32 0, 2
    %s35 = ssub.s32 0, %s34
    %s36 = smul.u32 %s33, %s35
    %s37 = sadd.s32 0, %s36
    %s38 = smul.u32 2, %s37
    %s39 = sld [smem:[#allocation3]]
    %p40 = scmp.eq.s32.totalorder %s39, 1
    // Predicated region
    $region10: #{tpu_custom_call.1} parent=1 // pred_check
      %p41 = pneg %p40
    $region11: #{tpu_custom_call.1} parent=1 // pred_check_branch
      %43 = sbr.rel (%p41) target = $region13
    $region12: #{tpu_custom_call.1} parent=1 // pred_region
      %v44 = vld [vmem:[#allocation4] sm:$0xff]
      %v45 = vld [vmem:[#allocation4 + $0x8] sm:$0xff]
      %v46 = vlaneseq
      %v47 = vand.u32 %v46, 127
      %v48 = vadd.s32 %v47, 128
      %vm49 = vcmp.eq.s32.totalorder %v47, 0
      %vm50 = vcmp.eq.s32.totalorder %v48, 0
      %v51 = vsub.s32 %v47, 1
      %v52 = vsub.s32 %v48, 1
      %v53 = vsel %vm49, 255, %v51
      %v54 = vsel %vm50, 255, %v52
      %55 = vrot.lane.b32.xlu0 %v47, 1
      %v56 = vpop.permute.xlu0 %55
      %57 = vrot.lane.b32.xlu0 %v48, 1
      %v58 = vpop.permute.xlu0 %57
      %vm59 = vcmp.lt.s32.totalorder %v47, 1
      %v60 = vsel %vm59, %v56, %v58
      %v61 = vsel %vm59, %v58, %v56
      %vm62 = vcmp.eq.s32.totalorder %v61, %v53
      %vm63 = vcmp.eq.s32.totalorder %v60, %v54
      %v64 = vsub.s32 255, %v47
      %v65 = vsub.s32 255, %v48
      %v66 = vsel %vm62, %v47, %v64
      %v67 = vsel %vm63, %v48, %v65
      %v68 = vlaneseq
      %v69 = vshrl.u32 %v68, 7
      %v70 = vsub.s32 0, %v69
      %v71 = vrot.slane %v66, %v70
      %v72 = vlaneseq
      %v73 = vshrl.u32 %v72, 7
      %v74 = vsub.s32 0, %v73
      %v75 = vrot.slane %v67, %v74
      %76 = vrot.lane.b32.xlu0 %v44, 1
      %v77 = vpop.permute.xlu0 %76
      %78 = vrot.lane.b32.xlu0 %v45, 1
      %v79 = vpop.permute.xlu0 %78
      %v80 = vsel %vm59, %v77, %v79
      %v81 = vsel %vm59, %v79, %v77
      %82 = vrot.lane.b32.xlu0 %v44, 127
      %v83 = vpop.permute.xlu0 %82
      %84 = vrot.lane.b32.xlu0 %v45, 127
      %v85 = vpop.permute.xlu0 %84
      %vm86 = vcmp.lt.s32.totalorder %v47, 127
      %v87 = vsel %vm86, %v83, %v85
      %v88 = vsel %vm86, %v85, %v83
      %v89 = vand.u32 %v71, 1
      %v90 = vand.u32 %v75, 1
      %vm91 = vcmp.ne.s32.totalorder %v89, 0
      %vm92 = vcmp.ne.s32.totalorder %v90, 0
      %v93 = vsel %vm91, %v81, %v87
      %v94 = vsel %vm92, %v80, %v88
      %95 = vrot.lane.b32.xlu0 %v93, 2
      %v96 = vpop.permute.xlu0 %95
      %97 = vrot.lane.b32.xlu0 %v94, 2
      %v98 = vpop.permute.xlu0 %97
      %vm99 = vcmp.lt.s32.totalorder %v47, 2
      %v100 = vsel %vm99, %v96, %v98
      %v101 = vsel %vm99, %v98, %v96
      %102 = vrot.lane.b32.xlu0 %v93, 126
      %v103 = vpop.permute.xlu0 %102
      %104 = vrot.lane.b32.xlu0 %v94, 126
      %v105 = vpop.permute.xlu0 %104
      %vm106 = vcmp.lt.s32.totalorder %v47, 126
      %v107 = vsel %vm106, %v103, %v105
      %v108 = vsel %vm106, %v105, %v103
      %v109 = vand.u32 %v71, 2
      %v110 = vand.u32 %v75, 2
      %vm111 = vcmp.ne.s32.totalorder %v109, 0
      %vm112 = vcmp.ne.s32.totalorder %v110, 0
      %v113 = vsel %vm111, %v101, %v107
      %v114 = vsel %vm112, %v100, %v108
      %115 = vrot.lane.b32.xlu0 %v113, 4
      %v116 = vpop.permute.xlu0 %115
      %117 = vrot.lane.b32.xlu0 %v114, 4
      %v118 = vpop.permute.xlu0 %117
      %vm119 = vcmp.lt.s32.totalorder %v47, 4
      %v120 = vsel %vm119, %v116, %v118
      %v121 = vsel %vm119, %v118, %v116
      %122 = vrot.lane.b32.xlu0 %v113, 124
      %v123 = vpop.permute.xlu0 %122
      %124 = vrot.lane.b32.xlu0 %v114, 124
      %v125 = vpop.permute.xlu0 %124
      %vm126 = vcmp.lt.s32.totalorder %v47, 124
      %v127 = vsel %vm126, %v123, %v125
      %v128 = vsel %vm126, %v125, %v123
      %v129 = vand.u32 %v71, 4
      %v130 = vand.u32 %v75, 4
      %vm131 = vcmp.ne.s32.totalorder %v129, 0
      %vm132 = vcmp.ne.s32.totalorder %v130, 0
      %v133 = vsel %vm131, %v121, %v127
      %v134 = vsel %vm132, %v120, %v128
      %135 = vrot.lane.b32.xlu0 %v133, 8
      %v136 = vpop.permute.xlu0 %135
      %137 = vrot.lane.b32.xlu0 %v134, 8
      %v138 = vpop.permute.xlu0 %137
      %vm139 = vcmp.lt.s32.totalorder %v47, 8
      %v140 = vsel %vm139, %v136, %v138
      %v141 = vsel %vm139, %v138, %v136
      %142 = vrot.lane.b32.xlu0 %v133, 120
      %v143 = vpop.permute.xlu0 %142
      %144 = vrot.lane.b32.xlu0 %v134, 120
      %v145 = vpop.permute.xlu0 %144
      %vm146 = vcmp.lt.s32.totalorder %v47, 120
      %v147 = vsel %vm146, %v143, %v145
      %v148 = vsel %vm146, %v145, %v143
      %v149 = vand.u32 %v71, 8
      %v150 = vand.u32 %v75, 8
      %vm151 = vcmp.ne.s32.totalorder %v149, 0
      %vm152 = vcmp.ne.s32.totalorder %v150, 0
      %v153 = vsel %vm151, %v141, %v147
      %v154 = vsel %vm152, %v140, %v148
      %155 = vst [vmem:[#allocation7] sm:$0xff] %v153
      %156 = vst [vmem:[#allocation7 + $0x8] sm:$0xff] %v154
    $region13: #{tpu_custom_call.1} parent=1 // pred_fallthru
      _
    %s157 = sld [smem:[#allocation3]]
    %p158 = scmp.eq.s32.totalorder %s157, 0
    // Predicated region
    $region14: #{tpu_custom_call.1} parent=1 // pred_check
      %p159 = pneg %p158
    $region15: #{tpu_custom_call.1} parent=1 // pred_check_branch
      %161 = sbr.rel (%p159) target = $region17
    $region16: #{tpu_custom_call.1} parent=1 // pred_region
      %v162 = vld [vmem:[#allocation4] sm:$0xff]
      %v163 = vld [vmem:[#allocation4 + $0x8] sm:$0xff]
      %v164 = vlaneseq
      %v165 = vand.u32 %v164, 127
      %v166 = vadd.s32 %v165, 128
      %vm167 = vcmp.eq.s32.totalorder %v165, 0
      %vm168 = vcmp.eq.s32.totalorder %v166, 0
      %v169 = vsub.s32 %v165, 1
      %v170 = vsub.s32 %v166, 1
      %v171 = vsel %vm167, 255, %v169
      %v172 = vsel %vm168, 255, %v170
      %173 = vrot.lane.b32.xlu0 %v165, 1
      %v174 = vpop.permute.xlu0 %173
      %175 = vrot.lane.b32.xlu0 %v166, 1
      %v176 = vpop.permute.xlu0 %175
      %vm177 = vcmp.lt.s32.totalorder %v165, 1
      %v178 = vsel %vm177, %v174, %v176
      %v179 = vsel %vm177, %v176, %v174
      %vm180 = vcmp.eq.s32.totalorder %v179, %v171
      %vm181 = vcmp.eq.s32.totalorder %v178, %v172
      %v182 = vsub.s32 255, %v165
      %v183 = vsub.s32 255, %v166
      %v184 = vsel %vm180, %v165, %v182
      %v185 = vsel %vm181, %v166, %v183
      %v186 = vlaneseq
      %v187 = vshrl.u32 %v186, 7
      %v188 = vsub.s32 0, %v187
      %v189 = vrot.slane %v184, %v188
      %v190 = vlaneseq
      %v191 = vshrl.u32 %v190, 7
      %v192 = vsub.s32 0, %v191
      %v193 = vrot.slane %v185, %v192
      %194 = vrot.lane.b32.xlu0 %v162, 16
      %v195 = vpop.permute.xlu0 %194
      %196 = vrot.lane.b32.xlu0 %v163, 16
      %v197 = vpop.permute.xlu0 %196
      %vm198 = vcmp.lt.s32.totalorder %v165, 16
      %v199 = vsel %vm198, %v195, %v197
      %v200 = vsel %vm198, %v197, %v195
      %201 = vrot.lane.b32.xlu0 %v162, 112
      %v202 = vpop.permute.xlu0 %201
      %203 = vrot.lane.b32.xlu0 %v163, 112
      %v204 = vpop.permute.xlu0 %203
      %vm205 = vcmp.lt.s32.totalorder %v165, 112
      %v206 = vsel %vm205, %v202, %v204
      %v207 = vsel %vm205, %v204, %v202
      %v208 = vand.u32 %v189, 16
      %v209 = vand.u32 %v193, 16
      %vm210 = vcmp.ne.s32.totalorder %v208, 0
      %vm211 = vcmp.ne.s32.totalorder %v209, 0
      %v212 = vsel %vm210, %v200, %v206
      %v213 = vsel %vm211, %v199, %v207
      %214 = vrot.lane.b32.xlu0 %v212, 32
      %v215 = vpop.permute.xlu0 %214
      %216 = vrot.lane.b32.xlu0 %v213, 32
      %v217 = vpop.permute.xlu0 %216
      %vm218 = vcmp.lt.s32.totalorder %v165, 32
      %v219 = vsel %vm218, %v215, %v217
      %v220 = vsel %vm218, %v217, %v215
      %221 = vrot.lane.b32.xlu0 %v212, 96
      %v222 = vpop.permute.xlu0 %221
      %223 = vrot.lane.b32.xlu0 %v213, 96
      %v224 = vpop.permute.xlu0 %223
      %vm225 = vcmp.lt.s32.totalorder %v165, 96
      %v226 = vsel %vm225, %v222, %v224
      %v227 = vsel %vm225, %v224, %v222
      %v228 = vand.u32 %v189, 32
      %v229 = vand.u32 %v193, 32
      %vm230 = vcmp.ne.s32.totalorder %v228, 0
      %vm231 = vcmp.ne.s32.totalorder %v229, 0
      %v232 = vsel %vm230, %v220, %v226
      %v233 = vsel %vm231, %v219, %v227
      %234 = vrot.lane.b32.xlu0 %v232, 64
      %v235 = vpop.permute.xlu0 %234
      %236 = vrot.lane.b32.xlu0 %v233, 64
      %v237 = vpop.permute.xlu0 %236
      %vm238 = vcmp.lt.s32.totalorder %v165, 64
      %v239 = vsel %vm238, %v235, %v237
      %v240 = vsel %vm238, %v237, %v235
      %v241 = vand.u32 %v189, 64
      %v242 = vand.u32 %v193, 64
      %vm243 = vcmp.ne.s32.totalorder %v241, 0
      %vm244 = vcmp.ne.s32.totalorder %v242, 0
      %v245 = vsel %vm243, %v240, %v239
      %v246 = vsel %vm244, %v239, %v240
      %247 = vst [vmem:[#allocation7] sm:$0xff] %v246
      %248 = vst [vmem:[#allocation7 + $0x8] sm:$0xff] %v245
    $region17: #{tpu_custom_call.1} parent=1 // pred_fallthru
      _
    // Predicated region
    $region18: #{tpu_custom_call.1} parent=1 // pred_check
      _
    $region19: #{tpu_custom_call.1} parent=1 // pred_check_branch
      %250 = sbr.rel (0) target = $region21
    $region20: #{tpu_custom_call.1} parent=1 // pred_region
      %s252 = ssub.s32 256, 256
      %253 = vsyncadd [#allocation6], %s252
      %s255 = sshll.u32 [#allocation7], 4
      %s256 = int_to_ptr.vmem [resolvable:$true] %s255
      %258 = dma.vmem_to_hbm [thread:$0]  %s256, 256, %s2, [#allocation6]
    $region21: #{tpu_custom_call.1} parent=1 // pred_fallthru
      _
    // Predicated region
    $region22: #{tpu_custom_call.1} parent=1 // pred_check
      _
    $region23: #{tpu_custom_call.1} parent=1 // pred_check_branch
      %260 = sbr.rel (0) target = $region25
    $region24: #{tpu_custom_call.1} parent=1 // pred_region
      %261 = dma.done [#allocation6], 256
    $region25: #{tpu_custom_call.1} parent=1 // pred_fallthru
      _
    %262 = vsyncpa [#allocation5], 1
    %263 = vsyncpa [#allocation6], 1

</llo_original>
